<compile_context>
chip_gen: v6e
topology: v6e:2x2x1
jax: 0.10.0
libtpu: 0.0.40
codegen_flags: <defaults>
</compile_context>

<pallas_src>
import jax
import jax.numpy as jnp
from jax.experimental import pallas as pl
from jax.experimental.pallas import tpu as pltpu

_LANE = 128


def _round_up(x, m):
    return ((x + m - 1) // m) * m


def _sublane_tile(itemsize):
    # 8 rows for f32, 16 for bf16, 32 for int8 (packed along sublanes).
    return max(1, 32 // (8 * itemsize)) * 8


def dtr_kernel(x_ref, wt_ref, bproj_ref, o_ref):
    # x_ref    : (Bt, S, D_in)   streamed batch tile of the input
    # wt_ref   : (D_in, D_out)   pre-transposed weight, VMEM-resident
    # bproj_ref: (S, D_out)      bias @ W^T (f32), VMEM-resident
    # o_ref    : (Bt, S, D_out)
    bt, s, d_in = x_ref.shape
    d_out = wt_ref.shape[1]

    # Collapse (Bt, S) into the row dim -> one big MXU matmul per grid step.
    # Layout no-op when S is a multiple of the sublane tile (e.g. S % 8 == 0
    # for f32); otherwise Mosaic inserts a relayout.
    m = x_ref[...].reshape(bt * s, d_in)
    y = jnp.dot(m, wt_ref[...], preferred_element_type=jnp.float32)
    y = y.reshape(bt, s, d_out) - bproj_ref[...]      # broadcast over Bt (f32)
    o_ref[...] = y.astype(o_ref.dtype)


def _pick_batch_tile(B, S, D_in, D_out, itemsize,
                     target_step_bytes=4 << 20,
                     vmem_tile_budget_bytes=28 << 20):
    """Pick the batch-tile size Bt.

    Each grid step should move ~target_step_bytes of *real* HBM traffic
    (x read + out write) so the fixed per-step overhead is amortized, while
    the *padded* VMEM footprint of the double-buffered x/out tiles stays
    under vmem_tile_budget_bytes (safe on v5e/v6e/v7x).
    """
    sublane = _sublane_tile(itemsize)
    s_pad = _round_up(S, sublane)
    din_pad = _round_up(D_in, _LANE)
    dout_pad = _round_up(D_out, _LANE)

    # Real HBM bytes per batch element (what the DMA actually transfers).
    hbm_per_b = S * (D_in + D_out) * itemsize
    bt = max(1, min(B, target_step_bytes // max(hbm_per_b, 1)))

    # Padded VMEM bytes per batch element (x + out tiles, double-buffered).
    vmem_per_b = 2 * s_pad * (din_pad + dout_pad) * itemsize
    bt = max(1, min(bt, vmem_tile_budget_bytes // max(vmem_per_b, 1)))

    # Keep at least two grid steps when B allows so v7x's two TensorCores
    # both get work; costs one extra cheap step on single-TC v5e/v6e.
    if B >= 2:
        bt = min(bt, -(-B // 2))
    bt = max(1, min(bt, B))

    # Prefer an exact divisor of B if one is within 2x of the target;
    # otherwise accept a single ragged last tile rather than shrinking Bt.
    for cand in range(bt, 0, -1):
        if B % cand == 0:
            if 2 * cand >= bt:
                bt = cand
            break
    return bt


def dtr_layer(x, bias, weight, dropout_p=0.0):
    """x: (B, S, D_in); bias: (1, S, D_in); weight: (D_out, D_in) [PyTorch layout]."""
    if dropout_p != 0.0:
        # TODO(synk): training-mode dropout not implemented.
        raise NotImplementedError("dtr_layer only implements the dropout p=0 path")

    B, S, D_in = x.shape
    D_out = weight.shape[0]
    itemsize = jnp.dtype(x.dtype).itemsize

    # One-time, tiny wrapper-side prep: MXU-native weight layout and the bias
    # folded through the linear layer (both negligible HBM traffic).
    w_t = jnp.transpose(weight)                                    # (D_in, D_out)
    bias_proj = jnp.dot(bias[0].astype(jnp.float32),
                        w_t.astype(jnp.float32))                   # (S, D_out), f32

    Bt = _pick_batch_tile(B, S, D_in, D_out, itemsize)
    grid = (pl.cdiv(B, Bt),)

    # Make the compiler's scoped-VMEM limit agree with the footprint the
    # tiling heuristic assumed (padded tiles + resident weight/bias_proj).
    sublane = _sublane_tile(itemsize)
    s_pad = _round_up(S, sublane)
    din_pad = _round_up(D_in, _LANE)
    dout_pad = _round_up(D_out, _LANE)
    tile_bytes = 2 * Bt * s_pad * (din_pad + dout_pad) * itemsize
    resident_bytes = 2 * (_round_up(D_in, sublane) * dout_pad
                          * jnp.dtype(w_t.dtype).itemsize
                          + s_pad * dout_pad * 4)
    vmem_limit = int(max(tile_bytes + resident_bytes + (4 << 20), 16 << 20))

    bytes_accessed = (x.size * itemsize
                      + w_t.size * jnp.dtype(w_t.dtype).itemsize
                      + bias_proj.size * 4
                      + B * S * D_out * itemsize)
    cost = pl.CostEstimate(flops=2 * B * S * D_in * D_out,
                           transcendentals=0,
                           bytes_accessed=bytes_accessed)

    return pl.pallas_call(
        dtr_kernel,
        out_shape=jax.ShapeDtypeStruct((B, S, D_out), x.dtype),
        grid_spec=pltpu.PrefetchScalarGridSpec(
            num_scalar_prefetch=0,
            grid=grid,
            in_specs=[
                # Streamed batch tile of x: (Bt, S, D_in).
                pl.BlockSpec((Bt, S, D_in), lambda b: (b, 0, 0)),
                # Pre-transposed weight, resident in VMEM (no re-DMA).
                pl.BlockSpec((D_in, D_out), lambda b: (0, 0)),
                # bias @ W^T, resident in VMEM.
                pl.BlockSpec((S, D_out), lambda b: (0, 0)),
            ],
            out_specs=pl.BlockSpec((Bt, S, D_out), lambda b: (b, 0, 0)),
        ),
        compiler_params=pltpu.CompilerParams(
            dimension_semantics=("parallel",),
            vmem_limit_bytes=vmem_limit),
        cost_estimate=cost,
    )(x, w_t, bias_proj)


if __name__ == "__main__":
    # Small shapes consistent with the module's forward:
    # batch=2, max_seq_length=8, input_size=32, output_size=32.
    B, S, D_in, D_out = 2, 8, 32, 32

    key = jax.random.PRNGKey(0)
    kx, kb, kw = jax.random.split(key, 3)

    x = jax.random.normal(kx, (B, S, D_in), dtype=jnp.float32)
    # Module init is bias = zeros(...); use a nonzero (trained-like) bias so
    # the broadcast-subtract path is actually exercised.
    bias = 0.1 * jax.random.normal(kb, (1, S, D_in), dtype=jnp.float32)
    # lin.weight ~ Normal(0, 0.02), shape (output_size, input_size).
    weight = 0.02 * jax.random.normal(kw, (D_out, D_in), dtype=jnp.float32)

    out = jax.block_until_ready(dtr_layer(x, bias, weight))

    # Reference: dropout p=0 -> identity; Linear has no bias.
    ref = jnp.einsum("bsd,od->bso", x - bias, weight)
    assert out.shape == (B, S, D_out)
    assert jnp.allclose(out, ref, atol=1e-5, rtol=1e-5), \
        float(jnp.max(jnp.abs(out - ref)))

    print("KERNEL_OK")
</pallas_src>

<mosaic_0001>
module attributes {stable_mosaic.version = 11 : i64} {
  func.func @dtr_kernel(%arg0: i32, %arg1: memref<1x8x32xf32, #tpu.memory_space<vmem>>, %arg2: memref<32x32xf32, #tpu.memory_space<vmem>>, %arg3: memref<8x32xf32, #tpu.memory_space<vmem>>, %arg4: memref<1x8x32xf32, #tpu.memory_space<vmem>>) attributes {dimension_semantics = [#tpu.dimension_semantics<parallel>], iteration_bounds = array<i64: 2>, scalar_prefetch = 0 : i64, scratch_operands = 0 : i64, tpu.core_type = #tpu.core_type<tc>, window_params = [{transform_indices = @transform_0, window_bounds = array<i64: 1, 8, 32>}, {pipeline_mode = #tpu.pipeline_mode<synchronous>, transform_indices = @transform_1, window_bounds = array<i64: 32, 32>}, {pipeline_mode = #tpu.pipeline_mode<synchronous>, transform_indices = @transform_2, window_bounds = array<i64: 8, 32>}, {transform_indices = @transform_3, window_bounds = array<i64: 1, 8, 32>}]} {
    %c0 = arith.constant 0 : index
    %c0_0 = arith.constant 0 : index
    %c0_1 = arith.constant 0 : index
    %0 = vector.load %arg1[%c0, %c0_0, %c0_1] : memref<1x8x32xf32, #tpu.memory_space<vmem>>, vector<1x8x32xf32>
    %1 = vector.shape_cast %0 : vector<1x8x32xf32> to vector<8x32xf32>
    %c0_2 = arith.constant 0 : index
    %c0_3 = arith.constant 0 : index
    %2 = vector.load %arg2[%c0_2, %c0_3] : memref<32x32xf32, #tpu.memory_space<vmem>>, vector<32x32xf32>
    %cst = arith.constant dense<0.000000e+00> : vector<8x32xf32>
    %3 = tpu.matmul %1, %2, %cst {dimension_numbers = #tpu.dot_dimension_numbers<[1], [0], [0], [1], [0, 0, 1, 1], [], []>} : vector<8x32xf32>, vector<32x32xf32>, vector<8x32xf32> -> vector<8x32xf32>
    %4 = vector.shape_cast %3 : vector<8x32xf32> to vector<1x8x32xf32>
    %c0_4 = arith.constant 0 : index
    %c0_5 = arith.constant 0 : index
    %5 = vector.load %arg3[%c0_4, %c0_5] : memref<8x32xf32, #tpu.memory_space<vmem>>, vector<8x32xf32>
    %6 = vector.shape_cast %5 : vector<8x32xf32> to vector<1x8x32xf32>
    %7 = arith.subf %4, %6 : vector<1x8x32xf32>
    %c0_6 = arith.constant 0 : index
    %c0_7 = arith.constant 0 : index
    %c0_8 = arith.constant 0 : index
    %8 = vector.load %arg4[%c0_6, %c0_7, %c0_8] : memref<1x8x32xf32, #tpu.memory_space<vmem>>, vector<1x8x32xf32>
    tpu.vector_store %arg4[%c0_6, %c0_7, %c0_8], %7 {strides = array<i32>} : memref<1x8x32xf32, #tpu.memory_space<vmem>>, vector<1x8x32xf32>,
    return
  }
  func.func @transform_0(%arg0: i32) -> (i32, i32, i32) {
    %c0_i32 = arith.constant 0 : i32
    %c0_i32_0 = arith.constant 0 : i32
    %c0_i32_1 = arith.constant 0 : i32
    return %arg0, %c0_i32, %c0_i32_0 : i32, i32, i32
  }
  func.func @transform_1(%arg0: i32) -> (i32, i32) {
    %c0_i32 = arith.constant 0 : i32
    %c0_i32_0 = arith.constant 0 : i32
    %c0_i32_1 = arith.constant 0 : i32
    return %c0_i32, %c0_i32_0 : i32, i32
  }
  func.func @transform_2(%arg0: i32) -> (i32, i32) {
    %c0_i32 = arith.constant 0 : i32
    %c0_i32_0 = arith.constant 0 : i32
    %c0_i32_1 = arith.constant 0 : i32
    return %c0_i32, %c0_i32_0 : i32, i32
  }
  func.func @transform_3(%arg0: i32) -> (i32, i32, i32) {
    %c0_i32 = arith.constant 0 : i32
    %c0_i32_0 = arith.constant 0 : i32
    %c0_i32_1 = arith.constant 0 : i32
    return %arg0, %c0_i32, %c0_i32_0 : i32, i32, i32
  }
}

</mosaic_0001>

<llo_original>
// kernel: tpu_custom_call.1
$region0: #{tpu_custom_call.1}
  #allocation0 [shape = 'u32[]', space=smem, size = 0x4, offset = 0x4, fixed_abs, tag = 'smem constant byte address 0x4 - core index']
  #allocation1 [shape = 'u32[144,128]{1,0:T(1,128)}', space=vmem, size = 0x12000, scoped, tag = 'internal scratch']
  %s0 = inlined_call_operand.hbm [shape: f32[2,8,32], index: 0, kind: input, shape index: {}]
  %s1 = inlined_call_operand.hbm [shape: f32[32,32], index: 1, kind: input, shape index: {}]
  %s2 = inlined_call_operand.hbm [shape: f32[8,32], index: 2, kind: input, shape index: {}]
  %s3 = inlined_call_operand.hbm [shape: f32[2,8,32], index: 3, kind: output, shape index: {}]
  %s4 = sld [smem:[#allocation0]]
  $region57: #{tpu_custom_call.1} parent=0
    _
  %s6 = ssub.s32 1, %s4
  %s7 = scalar_select 0, %s6, %s4
  $region1: #{tpu_custom_call.1} parent=0
    #allocation2 [shape = 'u8[8192]{0}', space=vmem, size = 0x2000, scoped, tag = 'input window, operand 0']
    #allocation3 [shape = 's32[2]{0}', space=sflag, size = 0x8, scoped, tag = 'scoped memory for tpu_custom_call.1']
    #allocation4 [shape = 's32[2]{0}', space=sflag, size = 0x8, scoped, tag = 'scoped memory for tpu_custom_call.1']
    #allocation5 [shape = 'u8[16384]{0}', space=vmem, size = 0x4000, scoped, tag = 'input window, operand 1, single buffered']
    #allocation6 [shape = 's32[1]{0}', space=sflag, size = 0x4, scoped, tag = 'scoped memory for tpu_custom_call.1']
    #allocation7 [shape = 'u8[4096]{0}', space=vmem, size = 0x1000, scoped, tag = 'input window, operand 2, single buffered']
    #allocation8 [shape = 'u8[8192]{0}', space=vmem, size = 0x2000, scoped, tag = 'output window, operand 0']
    %8 = vsyncpa [#allocation3], 0
    %s9 = scalar_lea.sflag [#allocation3], 1
    %10 = vsyncpa %s9, 0
    %11 = vsyncpa [#allocation6], 0
    %12 = vsyncpa [#allocation4], 0
    %s13 = scalar_lea.sflag [#allocation4], 1
    %14 = vsyncpa %s13, 0
    loop: start=0, step=1, limit=4
    $region2: #{tpu_custom_call.1} parent=1 // loop_pre_header
      _
    $region3: #{tpu_custom_call.1} parent=1 // loop_header
      %s16 = sphi 0, %s20
      %p17 = scmp.ge.s32.totalorder %s16, 4
      %s26 = sphi 0, %s28
      %s29 = sphi 0, %s26
      %s30 = sphi 0, %s29
      %s46 = sphi 0, %s30
      %s50 = sphi 0, %s50
      %s52 = sphi 0, %s50
      %s53 = sphi 0, %s52
      %s67 = sphi 0, %s53
      %s71 = sphi 0, %s71
      %s73 = sphi 0, %s71
      %s74 = sphi 0, %s73
      %s88 = sphi 0, %s74
      %s94 = sphi 0, %s96
      %s97 = sphi 0, %s94
      %s98 = sphi 0, %s97
      %s114 = sphi 0, %s98
    $region4: #{tpu_custom_call.1} parent=1 // loop_header_branch
      %19 = sbr.rel (%p17) target = $region8
    $region5: #{tpu_custom_call.1} parent=1 // loop_body
      %s21 = ssub.s32 %s16, 1
      %s22 = ssub.s32 %s16, 2
      %s23 = sadd.s32 %s16, 1
      %s24 = ssub.s32 %s16, %s23
      %p25 = scmp.eq.s32.totalorder %s24, 0
      %s27 = sadd.s32 %s26, 1
      %s28 = scalar_select %p25, %s26, %s27
      %p31 = pneg %p25
      %p32 = scmp.eq.s32.totalorder %s16, 1
      %p33 = por %p31, %p32
      %p34 = scmp.ne.s32.totalorder %s26, %s29
      %p35 = scmp.eq.s32.totalorder %s16, 0
      %p36 = por %p34, %p35
      %p37 = scmp.ne.s32.totalorder %s26, %s29
      %p38 = scmp.eq.s32.totalorder %s21, 1
      %p39 = por %p37, %p38
      %p40 = scmp.ne.s32.totalorder %s29, %s30
      %p41 = scmp.eq.s32.totalorder %s21, 0
      %p42 = por %p40, %p41
      %p43 = scmp.ne.s32.totalorder %s29, %s30
      %p44 = scmp.eq.s32.totalorder %s22, 1
      %p45 = por %p43, %p44
      %p47 = scmp.ne.s32.totalorder %s30, %s46
      %p48 = scmp.eq.s32.totalorder %s22, 0
      %p49 = por %p47, %p48
      %s51 = sadd.s32 %s50, 1
      %p54 = scmp.eq.s32.totalorder %s16, 1
      %p55 = scmp.ne.s32.totalorder %s50, %s52
      %p56 = scmp.eq.s32.totalorder %s16, 0
      %p57 = por %p55, %p56
      %p58 = scmp.ne.s32.totalorder %s50, %s52
      %p59 = scmp.eq.s32.totalorder %s21, 1
      %p60 = por %p58, %p59
      %p61 = scmp.ne.s32.totalorder %s52, %s53
      %p62 = scmp.eq.s32.totalorder %s21, 0
      %p63 = por %p61, %p62
      %p64 = scmp.ne.s32.totalorder %s52, %s53
      %p65 = scmp.eq.s32.totalorder %s22, 1
      %p66 = por %p64, %p65
      %p68 = scmp.ne.s32.totalorder %s53, %s67
      %p69 = scmp.eq.s32.totalorder %s22, 0
      %p70 = por %p68, %p69
      %s72 = sadd.s32 %s71, 1
      %p75 = scmp.eq.s32.totalorder %s16, 1
      %p76 = scmp.ne.s32.totalorder %s71, %s73
      %p77 = scmp.eq.s32.totalorder %s16, 0
      %p78 = por %p76, %p77
      %p79 = scmp.ne.s32.totalorder %s71, %s73
      %p80 = scmp.eq.s32.totalorder %s21, 1
      %p81 = por %p79, %p80
      %p82 = scmp.ne.s32.totalorder %s73, %s74
      %p83 = scmp.eq.s32.totalorder %s21, 0
      %p84 = por %p82, %p83
      %p85 = scmp.ne.s32.totalorder %s73, %s74
      %p86 = scmp.eq.s32.totalorder %s22, 1
      %p87 = por %p85, %p86
      %p89 = scmp.ne.s32.totalorder %s74, %s88
      %p90 = scmp.eq.s32.totalorder %s22, 0
      %p91 = por %p89, %p90
      %s92 = ssub.s32 %s16, %s23
      %p93 = scmp.eq.s32.totalorder %s92, 0
      %s95 = sadd.s32 %s94, 1
      %s96 = scalar_select %p93, %s94, %s95
      %p99 = pneg %p93
      %p100 = scmp.eq.s32.totalorder %s16, 1
      %p101 = por %p99, %p100
      %p102 = scmp.ne.s32.totalorder %s94, %s97
      %p103 = scmp.eq.s32.totalorder %s16, 0
      %p104 = por %p102, %p103
      %p105 = scmp.ne.s32.totalorder %s94, %s97
      %p106 = scmp.eq.s32.totalorder %s21, 1
      %p107 = por %p105, %p106
      %p108 = scmp.ne.s32.totalorder %s97, %s98
      %p109 = scmp.eq.s32.totalorder %s21, 0
      %p110 = por %p108, %p109
      %p111 = scmp.ne.s32.totalorder %s97, %s98
      %p112 = scmp.eq.s32.totalorder %s22, 1
      %p113 = por %p111, %p112
      %p115 = scmp.ne.s32.totalorder %s98, %s114
      %p116 = scmp.eq.s32.totalorder %s22, 0
      %p117 = por %p115, %p116
      %p118 = scmp.le.s32.totalorder 1, %s16
      %p119 = scmp.lt.s32.totalorder %s16, 3
      %p120 = pnand %p118, %p119
      %p121 = pneg %p120
      // Predicated region
      $region9: #{tpu_custom_call.1} parent=5 // pred_check
        _
      $region10: #{tpu_custom_call.1} parent=5 // pred_check_branch
        %123 = sbr.rel (%p120) target = $region12
      $region11: #{tpu_custom_call.1} parent=5 // pred_region
        %s124 = ssub.s32 %s16, 1
        // Predicated region
        $region13: #{tpu_custom_call.1} parent=11 // pred_check
          %p125 = pneg %p63
        $region14: #{tpu_custom_call.1} parent=11 // pred_check_branch
          %127 = sbr.rel (%p125) target = $region16
        $region15: #{tpu_custom_call.1} parent=11 // pred_region
          %s129 = ssub.s32 512, 512
          %130 = vsyncadd [#allocation6], %s129
          %s131 = sshll.u32 [#allocation5], 4
          %s132 = int_to_ptr.vmem [resolvable:$true] %s131
          %137 = dma.hbm_to_vmem [thread:$0]  %s1, 512, %s132, [#allocation6], 128, 128, 8
        $region16: #{tpu_custom_call.1} parent=11 // pred_fallthru
          _
        // Predicated region
        $region17: #{tpu_custom_call.1} parent=11 // pred_check
          %p138 = pneg %p84
        $region18: #{tpu_custom_call.1} parent=11 // pred_check_branch
          %140 = sbr.rel (%p138) target = $region20
        $region19: #{tpu_custom_call.1} parent=11 // pred_region
          %s142 = ssub.s32 128, 128
          %143 = vsyncadd [#allocation6], %s142
          %s145 = sshll.u32 [#allocation7], 4
          %s146 = int_to_ptr.vmem [resolvable:$true] %s145
          %148 = dma.hbm_to_vmem [thread:$0]  %s2, 128, %s146, [#allocation6]
        $region20: #{tpu_custom_call.1} parent=11 // pred_fallthru
          _
      $region12: #{tpu_custom_call.1} parent=5 // pred_fallthru
        _
      %p149 = scmp.lt.s32.totalorder %s16, 2
      // Predicated region
      $region21: #{tpu_custom_call.1} parent=5 // pred_check
        %p150 = pneg %p149
      $region22: #{tpu_custom_call.1} parent=5 // pred_check_branch
        %152 = sbr.rel (%p150) target = $region24
      $region23: #{tpu_custom_call.1} parent=5 // pred_region
        // Predicated region
        $region25: #{tpu_custom_call.1} parent=23 // pred_check
          %p153 = pneg %p36
        $region26: #{tpu_custom_call.1} parent=23 // pred_check_branch
          %155 = sbr.rel (%p153) target = $region28
        $region27: #{tpu_custom_call.1} parent=23 // pred_region
          %s156 = sand.u32 %s26, 1
          %s157 = scalar_lea.sflag [#allocation3], %s156
          %s158 = sand.u32 %s26, 1
          %s159 = smul.addr %s158, 8
          %s160 = scalar_lea.vmem [#allocation2], %s159
          %s162 = ssub.s32 128, 128
          %163 = vsyncadd %s157, %s162
          %s164 = smul.addr %s16, 128
          %s165 = scalar_lea.hbm %s0, %s164
          %s167 = sshll.u32 %s160, 4
          %s168 = int_to_ptr.vmem [resolvable:$true] %s167
          %170 = dma.hbm_to_vmem [thread:$0]  %s165, 128, %s168, %s157
        $region28: #{tpu_custom_call.1} parent=23 // pred_fallthru
          _
      $region24: #{tpu_custom_call.1} parent=5 // pred_fallthru
        _
      %p171 = scmp.le.s32.totalorder 1, %s16
      %p172 = scmp.lt.s32.totalorder %s16, 3
      %p173 = pnand %p171, %p172
      %p174 = pneg %p173
      // Predicated region
      $region29: #{tpu_custom_call.1} parent=5 // pred_check
        _
      $region30: #{tpu_custom_call.1} parent=5 // pred_check_branch
        %176 = sbr.rel (%p173) target = $region32
      $region31: #{tpu_custom_call.1} parent=5 // pred_region
        %s177 = ssub.s32 %s16, 1
        %s178 = sand.u32 %s29, 1
        %s179 = scalar_lea.sflag [#allocation3], %s178
        %s180 = sand.u32 %s29, 1
        %s181 = smul.addr %s180, 8
        %s182 = scalar_lea.vmem [#allocation2], %s181
        // Predicated region
        $region33: #{tpu_custom_call.1} parent=31 // pred_check
          %p183 = pneg %p42
        $region34: #{tpu_custom_call.1} parent=31 // pred_check_branch
          %185 = sbr.rel (%p183) target = $region36
        $region35: #{tpu_custom_call.1} parent=31 // pred_region
          %186 = dma.done %s179, 128
        $region36: #{tpu_custom_call.1} parent=31 // pred_fallthru
          _
        // Predicated region
        $region37: #{tpu_custom_call.1} parent=31 // pred_check
          %p187 = pneg %p63
        $region38: #{tpu_custom_call.1} parent=31 // pred_check_branch
          %189 = sbr.rel (%p187) target = $region40
        $region39: #{tpu_custom_call.1} parent=31 // pred_region
          %190 = dma.done [#allocation6], 512
        $region40: #{tpu_custom_call.1} parent=31 // pred_fallthru
          _
        // Predicated region
        $region41: #{tpu_custom_call.1} parent=31 // pred_check
          %p191 = pneg %p84
        $region42: #{tpu_custom_call.1} parent=31 // pred_check_branch
          %193 = sbr.rel (%p191) target = $region44
        $region43: #{tpu_custom_call.1} parent=31 // pred_region
          %194 = dma.done [#allocation6], 128
        $region44: #{tpu_custom_call.1} parent=31 // pred_fallthru
          _
        %s195 = sand.u32 %s29, 1
        %s196 = scalar_lea.sflag [#allocation3], %s195
        %s197 = sand.u32 %s29, 1
        %s198 = smul.addr %s197, 8
        %s199 = scalar_lea.vmem [#allocation2], %s198
        %p200 = pneg %p42
        %p201 = pneg %p39
        %p202 = pneg %p63
        %p203 = pneg %p60
        %p204 = pneg %p84
        %p205 = pneg %p81
        %p206 = pneg %p110
        %p207 = pneg %p107
        %s208 = sand.u32 %s97, 1
        %s209 = scalar_lea.sflag [#allocation4], %s208
        %s210 = sand.u32 %s97, 1
        %s211 = smul.addr %s210, 8
        %s212 = scalar_lea.vmem [#allocation8], %s211
        %v213 = vld [vmem:[%s182] sm:$0xff]
        %v214 = vld [vmem:[#allocation5] sm:$0xff]
        %v215 = vld [vmem:[#allocation5 + $0x8] sm:$0xff]
        %v216 = vld [vmem:[#allocation5 + $0x10] sm:$0xff]
        %v217 = vld [vmem:[#allocation5 + $0x18] sm:$0xff]
        %vm218 = vcmask 261120
        %v220 = vsel %vm218, %v213, 0
        %222 = vmatprep.subr.mxu0 0.0
        %223 = vmatpush1.msra.mxu0 0.0
        %224 = vmatprep.subr.mxu0 0.0
        %225 = vmatpush1.msra.mxu0 0.0
        %226 = vmatprep.subr.mxu0 0.0
        %227 = vmatpush1.msra.mxu0 0.0
        %228 = vmatprep.subr.mxu0 0.0
        %229 = vmatpush1.msra.mxu0 0.0
        %230 = vmatprep.subr.mxu0 0.0
        %231 = vmatpush1.msra.mxu0 0.0
        %232 = vmatprep.subr.mxu0 0.0
        %233 = vmatpush1.msra.mxu0 0.0
        %234 = vmatprep.subr.mxu0 0.0
        %235 = vmatpush1.msra.mxu0 0.0
        %236 = vmatprep.subr.mxu0 0.0
        %237 = vmatpush1.msra.mxu0 0.0
        %238 = vmatprep.subr.mxu0 0.0
        %239 = vmatpush1.msra.mxu0 0.0
        %240 = vmatprep.subr.mxu0 0.0
        %241 = vmatpush1.msra.mxu0 0.0
        %242 = vmatprep.subr.mxu0 0.0
        %243 = vmatpush1.msra.mxu0 0.0
        %244 = vmatprep.subr.mxu0 0.0
        %245 = vmatpush1.msra.mxu0 0.0
        %246 = vmatprep.subr.mxu0 0.0
        %247 = vmatpush1.msra.mxu0 %v217
        %248 = vmatprep.subr.mxu0 0.0
        %249 = vmatpush1.msra.mxu0 %v216
        %250 = vmatprep.subr.mxu0 0.0
        %251 = vmatpush1.msra.mxu0 %v215
        %252 = vmatprep.subr.mxu0 0.0
        %253 = vmatpush1.msra.mxu0 %v214
        %254 = vmatprep.subr.mxu0 0.0
        %255 = vmatpush2.msra.mxu0 0.0
        %256 = vmatprep.subr.mxu0 0.0
        %257 = vmatpush2.msra.mxu0 0.0
        %258 = vmatprep.subr.mxu0 0.0
        %259 = vmatpush2.msra.mxu0 0.0
        %260 = vmatprep.subr.mxu0 0.0
        %261 = vmatpush2.msra.mxu0 0.0
        %262 = vmatprep.subr.mxu0 0.0
        %263 = vmatpush2.msra.mxu0 0.0
        %264 = vmatprep.subr.mxu0 0.0
        %265 = vmatpush2.msra.mxu0 0.0
        %266 = vmatprep.subr.mxu0 0.0
        %267 = vmatpush2.msra.mxu0 0.0
        %268 = vmatprep.subr.mxu0 0.0
        %269 = vmatpush2.msra.mxu0 0.0
        %270 = vmatprep.subr.mxu0 0.0
        %271 = vmatpush2.msra.mxu0 0.0
        %272 = vmatprep.subr.mxu0 0.0
        %273 = vmatpush2.msra.mxu0 0.0
        %274 = vmatprep.subr.mxu0 0.0
        %275 = vmatpush2.msra.mxu0 0.0
        %276 = vmatprep.subr.mxu0 0.0
        %277 = vmatpush2.msra.mxu0 0.0
        %278 = vmatprep.subr.mxu0 0.0
        %279 = vmatpush2.msra.mxu0 0.0
        %280 = vmatprep.subr.mxu0 0.0
        %281 = vmatpush2.msra.mxu0 0.0
        %282 = vmatprep.subr.mxu0 0.0
        %283 = vmatpush2.msra.mxu0 0.0
        %284 = vmatprep.subr.mxu0 0.0
        %285 = vmatpush2.msra.mxu0 0.0
        %286 = vmatprep.mubr.f32.mxu0 0.0
        %287 = vmatmul.mubr.f32.gmra.mxu0 %v220
        %v288 = vpop.f32.mrf.mxu0
        %v289 = vadd.f32 0.0, %v288
        %v290 = vpop.f32.mrf.mxu0
        %291 = vdwg.mxu0
        %v292 = vld [vmem:[#allocation7] sm:$0xff]
        %v293 = vsub.f32 %v289, %v292
        %294 = vst.msk [vmem:[%s212] sm:$0xff] %vm218, %v293
        %s295 = sand.u32 %s97, 1
        %s296 = scalar_lea.sflag [#allocation4], %s295
        %s297 = sand.u32 %s97, 1
        %s298 = smul.addr %s297, 8
        %s299 = scalar_lea.vmem [#allocation8], %s298
        // Predicated region
        $region45: #{tpu_custom_call.1} parent=31 // pred_check
          %p300 = pneg %p107
        $region46: #{tpu_custom_call.1} parent=31 // pred_check_branch
          %302 = sbr.rel (%p300) target = $region48
        $region47: #{tpu_custom_call.1} parent=31 // pred_region
          %s304 = ssub.s32 128, 128
          %305 = vsyncadd %s296, %s304
          %s306 = smul.addr %s21, 128
          %s307 = scalar_lea.hbm %s3, %s306
          %s309 = sshll.u32 %s299, 4
          %s310 = int_to_ptr.vmem [resolvable:$true] %s309
          %312 = dma.vmem_to_hbm [thread:$0]  %s310, 128, %s307, %s296
        $region48: #{tpu_custom_call.1} parent=31 // pred_fallthru
          _
      $region32: #{tpu_custom_call.1} parent=5 // pred_fallthru
        _
      %p313 = scmp.le.s32.totalorder 2, %s16
      // Predicated region
      $region49: #{tpu_custom_call.1} parent=5 // pred_check
        %p314 = pneg %p313
      $region50: #{tpu_custom_call.1} parent=5 // pred_check_branch
        %316 = sbr.rel (%p314) target = $region52
      $region51: #{tpu_custom_call.1} parent=5 // pred_region
        %s317 = ssub.s32 %s16, 2
        // Predicated region
        $region53: #{tpu_custom_call.1} parent=51 // pred_check
          %p318 = pneg %p113
        $region54: #{tpu_custom_call.1} parent=51 // pred_check_branch
          %320 = sbr.rel (%p318) target = $region56
        $region55: #{tpu_custom_call.1} parent=51 // pred_region
          %s321 = sand.u32 %s98, 1
          %s322 = scalar_lea.sflag [#allocation4], %s321
          %s323 = sand.u32 %s98, 1
          %s324 = smul.addr %s323, 8
          %s325 = scalar_lea.vmem [#allocation8], %s324
          %326 = dma.done %s322, 128
        $region56: #{tpu_custom_call.1} parent=51 // pred_fallthru
          _
      $region52: #{tpu_custom_call.1} parent=5 // pred_fallthru
        _
    $region6: #{tpu_custom_call.1} parent=1 // loop_footer
      %s20 = sadd.s32 1, %s16
    $region7: #{tpu_custom_call.1} parent=1 // loop_footer_branch
      %15 = sbr.rel target = $region3
    $region8: #{tpu_custom_call.1} parent=1 // loop_exit
      _
    %327 = vsyncpa [#allocation3], 1
    %s328 = scalar_lea.sflag [#allocation3], 1
    %329 = vsyncpa %s328, 1
    %330 = vsyncpa [#allocation6], 1
    %331 = vsyncpa [#allocation4], 1
    %s332 = scalar_lea.sflag [#allocation4], 1
    %333 = vsyncpa %s332, 1

</llo_original>
